<compile_context>
chip_gen: v7x
topology: tpu7x:2x2x1
jax: 0.10.0
libtpu: 0.0.40
codegen_flags: <defaults>
</compile_context>

<pallas_src>
import jax
import jax.numpy as jnp
from jax import lax
from jax.experimental import pallas as pl
from jax.experimental.pallas import tpu as pltpu

_LANE = 128                      # lane-dense last dim (full vreg width)
_SUBLANE = 8
_TILE_BYTES = 4 * 1024 * 1024    # ~4 MiB per tile; 4 bufs (in+out, 2-deep) = 16 MiB
_INV_SQRT2 = 0.7071067811865476  # 1/sqrt(2), folded at trace time


def _gelu_exact_jnp(x):
    """Plain-JAX exact GELU (tail / tiny-tensor fallback)."""
    xf = x.astype(jnp.float32)
    half = 0.5 * xf
    return (half + half * lax.erf(xf * _INV_SQRT2)).astype(x.dtype)


def _gelu_kernel(x_ref, o_ref):
    x = x_ref[...].astype(jnp.float32)
    # Exact GELU (PyTorch nn.GELU default): 0.5*x*(1+erf(x/sqrt(2)))
    # written as half + half*erf(...) so the constant folds and the 0.5*x fuses.
    half = x * 0.5
    o_ref[...] = (half + half * lax.erf(x * _INV_SQRT2)).astype(o_ref.dtype)


def gelu_nchw(x):
    """x: (N, C, H, W). Returns GELU(x), same shape/dtype.

    Matches Permute([0,2,3,1]) -> nn.GELU() -> Permute([0,3,1,2]) exactly:
    the permutes only change layout for an elementwise op, so we skip them and
    operate on the flat contiguous buffer reshaped to a lane-dense 2D view.
    """
    orig_shape = x.shape
    orig_dtype = x.dtype
    total = x.size
    itemsize = jnp.dtype(orig_dtype).itemsize

    flat = x.reshape(-1)
    main = (total // _LANE) * _LANE          # 128-aligned prefix -> Pallas

    if main == 0:
        # Degenerate tiny tensor: not worth a kernel launch.
        return _gelu_exact_jnp(flat).reshape(orig_shape)

    rows = main // _LANE

    # dtype-aware tile: ~4 MiB => 8192 rows for f32, 16384 rows for bf16.
    tile_rows = max(_SUBLANE,
                    (_TILE_BYTES // (_LANE * itemsize)) // _SUBLANE * _SUBLANE)
    if tile_rows >= rows:
        # Single block equal to the full array dims (alignment exception holds
        # even if rows isn't a multiple of 8).
        tile_rows = rows
    grid = (pl.cdiv(rows, tile_rows),)

    x2d = (flat if main == total else flat[:main]).reshape(rows, _LANE)

    cost = pl.CostEstimate(
        flops=4 * main,                      # a few VPU ops per element
        transcendentals=main,                # one erf per element
        bytes_accessed=2 * main * itemsize,  # pure HBM streaming: 1R + 1W
    )

    out2d = pl.pallas_call(
        _gelu_kernel,
        out_shape=jax.ShapeDtypeStruct((rows, _LANE), orig_dtype),
        grid_spec=pltpu.PrefetchScalarGridSpec(
            num_scalar_prefetch=0,
            grid=grid,
            in_specs=[pl.BlockSpec((tile_rows, _LANE), lambda i: (i, 0))],
            out_specs=pl.BlockSpec((tile_rows, _LANE), lambda i: (i, 0)),
        ),
        compiler_params=pltpu.CompilerParams(
            dimension_semantics=("parallel",),   # shard row tiles across TCs
            vmem_limit_bytes=32 * 1024 * 1024,   # 16 MiB needed; safe on v7x's 64 MiB
        ),
        cost_estimate=cost,
    )(x2d)

    out_flat = out2d.reshape(-1)
    if main != total:
        # <128-element tail (only for non-128-aligned sizes): plain jnp.
        out_flat = jnp.concatenate([out_flat, _gelu_exact_jnp(flat[main:])])
    return out_flat.reshape(orig_shape)


gelu_nchw_jit = jax.jit(gelu_nchw)


if __name__ == "__main__":
    key = jax.random.PRNGKey(0)
    x = jax.random.normal(key, (2, 4, 16, 16), dtype=jnp.float32)  # NCHW

    out = gelu_nchw_jit(x)
    jax.block_until_ready(out)

    # sanity-check against pure-JAX reference (exact GELU)
    ref = 0.5 * x * (1.0 + lax.erf(x / jnp.sqrt(2.0)))
    assert out.shape == x.shape and out.dtype == x.dtype
    assert jnp.allclose(out, ref, atol=1e-5, rtol=1e-5)

    print("KERNEL_OK")
</pallas_src>

<mosaic_0001>
module attributes {stable_mosaic.version = 11 : i64} {
  func.func @_gelu_kernel(%arg0: i32, %arg1: memref<16x128xf32, #tpu.memory_space<vmem>>, %arg2: memref<16x128xf32, #tpu.memory_space<vmem>>) attributes {dimension_semantics = [#tpu.dimension_semantics<parallel>], iteration_bounds = array<i64: 1>, scalar_prefetch = 0 : i64, scratch_operands = 0 : i64, tpu.core_type = #tpu.core_type<tc>, window_params = [{transform_indices = @transform_0, window_bounds = array<i64: 16, 128>}, {transform_indices = @transform_1, window_bounds = array<i64: 16, 128>}]} {
    %c0 = arith.constant 0 : index
    %c0_0 = arith.constant 0 : index
    %0 = vector.load %arg1[%c0, %c0_0] : memref<16x128xf32, #tpu.memory_space<vmem>>, vector<16x128xf32>
    %cst = arith.constant 5.000000e-01 : f32
    %1 = vector.broadcast %cst : f32 to vector<16x128xf32>
    %2 = arith.mulf %0, %1 : vector<16x128xf32>
    %cst_1 = arith.constant 0.707106769 : f32
    %3 = vector.broadcast %cst_1 : f32 to vector<16x128xf32>
    %4 = arith.mulf %0, %3 : vector<16x128xf32>
    %5 = math.erf %4 : vector<16x128xf32>
    %6 = arith.mulf %2, %5 : vector<16x128xf32>
    %7 = arith.addf %2, %6 : vector<16x128xf32>
    %c0_2 = arith.constant 0 : index
    %c0_3 = arith.constant 0 : index
    %8 = vector.load %arg2[%c0_2, %c0_3] : memref<16x128xf32, #tpu.memory_space<vmem>>, vector<16x128xf32>
    tpu.vector_store %arg2[%c0_2, %c0_3], %7 {strides = array<i32>} : memref<16x128xf32, #tpu.memory_space<vmem>>, vector<16x128xf32>,
    return
  }
  func.func @transform_0(%arg0: i32) -> (i32, i32) {
    %c0_i32 = arith.constant 0 : i32
    %c0_i32_0 = arith.constant 0 : i32
    return %arg0, %c0_i32 : i32, i32
  }
  func.func @transform_1(%arg0: i32) -> (i32, i32) {
    %c0_i32 = arith.constant 0 : i32
    %c0_i32_0 = arith.constant 0 : i32
    return %arg0, %c0_i32 : i32, i32
  }
}

</mosaic_0001>

<llo_original>
// kernel: gelu_nchw.1
$region0: #{gelu_nchw.1}
  #allocation0 [shape = 'u32[]', space=smem, size = 0x4, offset = 0x4, fixed_abs, tag = 'smem constant byte address 0x4 - core index']
  #allocation1 [shape = 'u32[144,128]{1,0:T(1,128)}', space=vmem, size = 0x12000, scoped, tag = 'internal scratch']
  %s0 = inlined_call_operand.vmem [shape: f32[16,128], index: 0, kind: input, shape index: {}]
  %s1 = inlined_call_operand.vmem [shape: f32[16,128], index: 1, kind: output, shape index: {}]
  %s2 = sld [smem:[#allocation0]]
  $region14: #{gelu_nchw.1} parent=0
    _
  %s4 = ssub.s32 1, %s2
  %s5 = scalar_select 0, %s4, %s2
  // Predicated region
  $region2: #{gelu_nchw.1} parent=0 // pred_check
    _
  $region3: #{gelu_nchw.1} parent=0 // pred_check_branch
    %7 = sbr.rel (0) target = $region5
  $region4: #{gelu_nchw.1} parent=0 // pred_region
    _
  $region5: #{gelu_nchw.1} parent=0 // pred_fallthru
    _
  %v8 = vld [vmem:[%s0] sm:$0xff]
  %v9 = vld [vmem:[%s0 + $0x8] sm:$0xff]
  %v10 = vmul.f32 %v8, 0.5
  %v11 = vmul.f32 %v9, 0.5
  %v12 = vmul.f32 %v8, 0.70710677
  %v13 = vmul.f32 %v9, 0.70710677
  %v14 = verf.f32.pop %v12
  %v15 = verf.f32.pop %v13
  %v16 = vmul.f32 %v10, %v14
  %v17 = vmul.f32 %v11, %v15
  %v18 = vadd.f32 %v10, %v16
  %v19 = vadd.f32 %v11, %v17
  %20 = vst [vmem:[%s1] sm:$0xff] %v18
  %21 = vst [vmem:[%s1 + $0x8] sm:$0xff] %v19
  // Predicated region
  $region6: #{gelu_nchw.1} parent=0 // pred_check
    _
  $region7: #{gelu_nchw.1} parent=0 // pred_check_branch
    %23 = sbr.rel (0) target = $region9
  $region8: #{gelu_nchw.1} parent=0 // pred_region
    _
  $region9: #{gelu_nchw.1} parent=0 // pred_fallthru
    _
  // Predicated region
  $region10: #{gelu_nchw.1} parent=0 // pred_check
    _
  $region11: #{gelu_nchw.1} parent=0 // pred_check_branch
    %25 = sbr.rel (0) target = $region13
  $region12: #{gelu_nchw.1} parent=0 // pred_region
    _
  $region13: #{gelu_nchw.1} parent=0 // pred_fallthru
    _

</llo_original>
